<compile_context>
chip_gen: v7x
topology: tpu7x:2x2x1
jax: 0.10.0
libtpu: 0.0.40
codegen_flags: <defaults>
</compile_context>

<pallas_src>
import functools

import jax
import jax.numpy as jnp
from jax.experimental import pallas as pl
from jax.experimental.pallas import tpu as pltpu

BN_EPS = 1e-5
LANE = 128
DEFAULT_TILE_N = 256               # multiple of 256 fills the v6e/v7x MXU; /128 for v5e
VMEM_LIMIT_BYTES = 48 * 1024 * 1024  # explicit scoped VMEM; safely under v7x's 64 MiB


def _round_up(n, m):
    return ((n + m - 1) // m) * m


# ----------------------------- pass 1: BN statistics -----------------------------
def _stats_kernel(x_ref, w1t_ref, gamma_ref, beta_ref, scale_ref, shift_ref, *, inv_n):
    """Accumulate per-channel sum / sumsq of h = x @ W1^T; finalize folded scale/shift."""
    @pl.when(pl.program_id(0) == 0)
    def _():
        scale_ref[...] = jnp.zeros_like(scale_ref)   # running sum(h)
        shift_ref[...] = jnp.zeros_like(shift_ref)   # running sum(h*h)

    h = jnp.dot(x_ref[...], w1t_ref[...], preferred_element_type=jnp.float32)
    scale_ref[...] += jnp.sum(h, axis=0, keepdims=True)
    shift_ref[...] += jnp.sum(h * h, axis=0, keepdims=True)

    @pl.when(pl.program_id(0) == pl.num_programs(0) - 1)
    def _():
        mean = scale_ref[...] * inv_n
        var = jnp.maximum(shift_ref[...] * inv_n - mean * mean, 0.0)
        inv_std = jax.lax.rsqrt(var + BN_EPS)        # EUP slot; effectively free
        scale = gamma_ref[...] * inv_std
        scale_ref[...] = scale
        shift_ref[...] = beta_ref[...] - mean * scale


# ---------------------- pass 2: normalize + ReLU + second matmul ------------------
def _apply_kernel(x_ref, w1t_ref, scale_ref, shift_ref, w2t_ref, b2_ref, o_ref):
    h = jnp.dot(x_ref[...], w1t_ref[...], preferred_element_type=jnp.float32)
    a = jnp.maximum(h * scale_ref[...] + shift_ref[...], 0.0)   # folded BN as one FMA
    o_ref[...] = (jnp.dot(a, w2t_ref[...], preferred_element_type=jnp.float32)
                  + b2_ref[...]).astype(o_ref.dtype)


def mlp_v3_forward(x, params, output_dim, *, tile_n=DEFAULT_TILE_N):
    """x: (B, T, Din) float32 -> (B, T, output_dim) float32 (training-mode BN)."""
    w1t, gamma, beta, w2t, b2 = params            # channel dims already padded to 128
    B, T, Din = x.shape
    Hp = w1t.shape[1]
    Dp = w2t.shape[1]
    N = B * T

    tile_n = max(8, min(tile_n, _round_up(N, 8)))
    n_pad = _round_up(N, tile_n)
    num_tiles = n_pad // tile_n

    x2 = x.reshape(N, Din).astype(jnp.float32)
    if n_pad != N:
        # Zero rows: Linear-1 has no bias, so padded rows contribute 0 to the sums;
        # dividing by the true N keeps the BatchNorm statistics exact.
        x2 = jnp.pad(x2, ((0, n_pad - N), (0, 0)))

    row_spec = pl.BlockSpec((tile_n, Din), lambda i: (i, 0))
    w1_spec = pl.BlockSpec((Din, Hp), lambda i: (0, 0))
    vec_h_spec = pl.BlockSpec((1, Hp), lambda i: (0, 0))

    scale, shift = pl.pallas_call(
        functools.partial(_stats_kernel, inv_n=1.0 / N),
        out_shape=(jax.ShapeDtypeStruct((1, Hp), jnp.float32),
                   jax.ShapeDtypeStruct((1, Hp), jnp.float32)),
        grid=(num_tiles,),
        in_specs=[row_spec, w1_spec, vec_h_spec, vec_h_spec],
        out_specs=(vec_h_spec, vec_h_spec),
        compiler_params=pltpu.CompilerParams(
            dimension_semantics=("arbitrary",),        # carried accumulator over N tiles
            vmem_limit_bytes=VMEM_LIMIT_BYTES),
        cost_estimate=pl.CostEstimate(
            flops=int(2 * n_pad * Din * Hp + 4 * n_pad * Hp),
            transcendentals=int(Hp),
            bytes_accessed=int(4 * (n_pad * Din + Din * Hp + 4 * Hp))),
    )(x2, w1t, gamma, beta)

    out_pad = pl.pallas_call(
        _apply_kernel,
        out_shape=jax.ShapeDtypeStruct((n_pad, Dp), jnp.float32),
        grid=(num_tiles,),
        in_specs=[row_spec, w1_spec, vec_h_spec, vec_h_spec,
                  pl.BlockSpec((Hp, Dp), lambda i: (0, 0)),
                  pl.BlockSpec((1, Dp), lambda i: (0, 0))],
        out_specs=pl.BlockSpec((tile_n, Dp), lambda i: (i, 0)),   # lane-dense output slab
        compiler_params=pltpu.CompilerParams(
            dimension_semantics=("parallel",),         # independent tiles -> both TCs
            vmem_limit_bytes=VMEM_LIMIT_BYTES),
        cost_estimate=pl.CostEstimate(
            flops=int(2 * n_pad * Hp * (Din + Dp) + 3 * n_pad * Hp),
            transcendentals=0,
            bytes_accessed=int(4 * (n_pad * (Din + Dp) + Din * Hp + Hp * Dp
                                    + 2 * Hp + Dp))),
    )(x2, w1t, scale, shift, w2t, b2)

    return out_pad[:N, :output_dim].reshape(B, T, output_dim)


def init_params(key, input_dim, hidden_dim, output_dim):
    """Matches MLPv3.__init__ (num_layers=2, norm_type='bn'):
       xavier_normal_ on the k=1 Conv1d weights (fan_in=in, fan_out=out),
       zero bias on the final conv, BatchNorm gamma=1 / beta=0.
       Weights are pre-transposed and zero-padded to lane multiples (glue)."""
    k1, k2 = jax.random.split(key, 2)

    def xavier_normal(k, fan_out, fan_in):
        std = (2.0 / (fan_in + fan_out)) ** 0.5
        return std * jax.random.normal(k, (fan_out, fan_in), dtype=jnp.float32)

    w1 = xavier_normal(k1, hidden_dim, input_dim)    # (H, Din)   PyTorch layout
    w2 = xavier_normal(k2, output_dim, hidden_dim)   # (Dout, H)

    hp = _round_up(hidden_dim, LANE)
    dp = _round_up(output_dim, LANE)

    w1t = jnp.zeros((input_dim, hp), jnp.float32).at[:, :hidden_dim].set(w1.T)
    w2t = jnp.zeros((hp, dp), jnp.float32).at[:hidden_dim, :output_dim].set(w2.T)
    b2 = jnp.zeros((1, dp), jnp.float32)
    gamma = jnp.ones((1, hp), jnp.float32)
    beta = jnp.zeros((1, hp), jnp.float32)
    return (w1t, gamma, beta, w2t, b2)


if __name__ == "__main__":
    B, T = 2, 8
    input_dim, hidden_dim, output_dim = 16, 32, 8

    key = jax.random.PRNGKey(0)
    kx, kp = jax.random.split(key)
    x = jax.random.normal(kx, (B, T, input_dim), dtype=jnp.float32)
    params = init_params(kp, input_dim, hidden_dim, output_dim)

    out = mlp_v3_forward(x, params, output_dim)
    jax.block_until_ready(out)

    # Pure-JAX reference of the same math (unpadded weights, two-pass BN stats).
    w1t_p, gamma_p, beta_p, w2t_p, b2_p = params
    w1t_r = w1t_p[:, :hidden_dim]
    gamma_r = gamma_p[:, :hidden_dim]
    beta_r = beta_p[:, :hidden_dim]
    w2t_r = w2t_p[:hidden_dim, :output_dim]
    b2_r = b2_p[:, :output_dim]

    h = x.reshape(-1, input_dim) @ w1t_r
    m = h.mean(0, keepdims=True)
    v = ((h - m) ** 2).mean(0, keepdims=True)
    ref = jnp.maximum((h - m) / jnp.sqrt(v + BN_EPS) * gamma_r + beta_r, 0.0) @ w2t_r + b2_r
    ref = ref.reshape(B, T, output_dim)

    assert jnp.allclose(out, ref, atol=1e-4, rtol=1e-4), float(jnp.abs(out - ref).max())
    print("KERNEL_OK")
</pallas_src>

<mosaic_0001>
module attributes {stable_mosaic.version = 11 : i64} {
  func.func @_stats_kernel(%arg0: i32, %arg1: memref<16x16xf32, #tpu.memory_space<vmem>>, %arg2: memref<16x128xf32, #tpu.memory_space<vmem>>, %arg3: memref<1x128xf32, #tpu.memory_space<vmem>>, %arg4: memref<1x128xf32, #tpu.memory_space<vmem>>, %arg5: memref<1x128xf32, #tpu.memory_space<vmem>>, %arg6: memref<1x128xf32, #tpu.memory_space<vmem>>) attributes {dimension_semantics = [#tpu.dimension_semantics<arbitrary>], iteration_bounds = array<i64: 1>, scalar_prefetch = 0 : i64, scratch_operands = 0 : i64, tpu.core_type = #tpu.core_type<tc>, window_params = [{transform_indices = @transform_0, window_bounds = array<i64: 16, 16>}, {pipeline_mode = #tpu.pipeline_mode<synchronous>, transform_indices = @transform_1, window_bounds = array<i64: 16, 128>}, {pipeline_mode = #tpu.pipeline_mode<synchronous>, transform_indices = @transform_2, window_bounds = array<i64: 1, 128>}, {pipeline_mode = #tpu.pipeline_mode<synchronous>, transform_indices = @transform_3, window_bounds = array<i64: 1, 128>}, {pipeline_mode = #tpu.pipeline_mode<synchronous>, transform_indices = @transform_4, window_bounds = array<i64: 1, 128>}, {pipeline_mode = #tpu.pipeline_mode<synchronous>, transform_indices = @transform_5, window_bounds = array<i64: 1, 128>}]} {
    %c0_i32 = arith.constant 0 : i32
    %0 = arith.cmpi eq, %arg0, %c0_i32 : i32
    %1 = arith.extui %0 : i1 to i32
    %c0_i32_0 = arith.constant 0 : i32
    %2 = arith.cmpi ne, %1, %c0_i32_0 : i32
    scf.if %2 {
      %cst_16 = arith.constant 0.000000e+00 : f32
      %20 = vector.broadcast %cst_16 : f32 to vector<1x128xf32>
      %c0_17 = arith.constant 0 : index
      %c0_18 = arith.constant 0 : index
      %21 = vector.load %arg5[%c0_17, %c0_18] : memref<1x128xf32, #tpu.memory_space<vmem>>, vector<1x128xf32>
      tpu.vector_store %arg5[%c0_17, %c0_18], %20 {strides = array<i32>} : memref<1x128xf32, #tpu.memory_space<vmem>>, vector<1x128xf32>,
      %cst_19 = arith.constant 0.000000e+00 : f32
      %22 = vector.broadcast %cst_19 : f32 to vector<1x128xf32>
      %c0_20 = arith.constant 0 : index
      %c0_21 = arith.constant 0 : index
      %23 = vector.load %arg6[%c0_20, %c0_21] : memref<1x128xf32, #tpu.memory_space<vmem>>, vector<1x128xf32>
      tpu.vector_store %arg6[%c0_20, %c0_21], %22 {strides = array<i32>} : memref<1x128xf32, #tpu.memory_space<vmem>>, vector<1x128xf32>,
    } else {
    }
    %c0 = arith.constant 0 : index
    %c0_1 = arith.constant 0 : index
    %3 = vector.load %arg1[%c0, %c0_1] : memref<16x16xf32, #tpu.memory_space<vmem>>, vector<16x16xf32>
    %c0_2 = arith.constant 0 : index
    %c0_3 = arith.constant 0 : index
    %4 = vector.load %arg2[%c0_2, %c0_3] : memref<16x128xf32, #tpu.memory_space<vmem>>, vector<16x128xf32>
    %cst = arith.constant dense<0.000000e+00> : vector<16x128xf32>
    %5 = tpu.matmul %3, %4, %cst {dimension_numbers = #tpu.dot_dimension_numbers<[1], [0], [0], [1], [0, 0, 1, 1], [], []>} : vector<16x16xf32>, vector<16x128xf32>, vector<16x128xf32> -> vector<16x128xf32>
    %c0_4 = arith.constant 0 : index
    %c0_5 = arith.constant 0 : index
    %6 = vector.load %arg5[%c0_4, %c0_5] : memref<1x128xf32, #tpu.memory_space<vmem>>, vector<1x128xf32>
    %cst_6 = arith.constant dense<0.000000e+00> : vector<128xf32>
    %7 = vector.multi_reduction <add>, %5, %cst_6 [0] : vector<16x128xf32> to vector<128xf32>
    %8 = vector.shape_cast %7 : vector<128xf32> to vector<1x128xf32>
    %9 = arith.addf %6, %8 : vector<1x128xf32>
    %c0_7 = arith.constant 0 : index
    %c0_8 = arith.constant 0 : index
    %10 = vector.load %arg5[%c0_7, %c0_8] : memref<1x128xf32, #tpu.memory_space<vmem>>, vector<1x128xf32>
    tpu.vector_store %arg5[%c0_7, %c0_8], %9 {strides = array<i32>} : memref<1x128xf32, #tpu.memory_space<vmem>>, vector<1x128xf32>,
    %c0_9 = arith.constant 0 : index
    %c0_10 = arith.constant 0 : index
    %11 = vector.load %arg6[%c0_9, %c0_10] : memref<1x128xf32, #tpu.memory_space<vmem>>, vector<1x128xf32>
    %12 = arith.mulf %5, %5 : vector<16x128xf32>
    %cst_11 = arith.constant dense<0.000000e+00> : vector<128xf32>
    %13 = vector.multi_reduction <add>, %12, %cst_11 [0] : vector<16x128xf32> to vector<128xf32>
    %14 = vector.shape_cast %13 : vector<128xf32> to vector<1x128xf32>
    %15 = arith.addf %11, %14 : vector<1x128xf32>
    %c0_12 = arith.constant 0 : index
    %c0_13 = arith.constant 0 : index
    %16 = vector.load %arg6[%c0_12, %c0_13] : memref<1x128xf32, #tpu.memory_space<vmem>>, vector<1x128xf32>
    tpu.vector_store %arg6[%c0_12, %c0_13], %15 {strides = array<i32>} : memref<1x128xf32, #tpu.memory_space<vmem>>, vector<1x128xf32>,
    %c0_i32_14 = arith.constant 0 : i32
    %17 = arith.cmpi eq, %arg0, %c0_i32_14 : i32
    %18 = arith.extui %17 : i1 to i32
    %c0_i32_15 = arith.constant 0 : i32
    %19 = arith.cmpi ne, %18, %c0_i32_15 : i32
    scf.if %19 {
      %c0_16 = arith.constant 0 : index
      %c0_17 = arith.constant 0 : index
      %20 = vector.load %arg5[%c0_16, %c0_17] : memref<1x128xf32, #tpu.memory_space<vmem>>, vector<1x128xf32>
      %cst_18 = arith.constant 6.250000e-02 : f32
      %21 = vector.broadcast %cst_18 : f32 to vector<1x128xf32>
      %22 = arith.mulf %20, %21 : vector<1x128xf32>
      %c0_19 = arith.constant 0 : index
      %c0_20 = arith.constant 0 : index
      %23 = vector.load %arg6[%c0_19, %c0_20] : memref<1x128xf32, #tpu.memory_space<vmem>>, vector<1x128xf32>
      %cst_21 = arith.constant 6.250000e-02 : f32
      %24 = vector.broadcast %cst_21 : f32 to vector<1x128xf32>
      %25 = arith.mulf %23, %24 : vector<1x128xf32>
      %26 = arith.mulf %22, %22 : vector<1x128xf32>
      %27 = arith.subf %25, %26 : vector<1x128xf32>
      %cst_22 = arith.constant 0.000000e+00 : f32
      %28 = vector.broadcast %cst_22 : f32 to vector<1x128xf32>
      %29 = arith.maximumf %27, %28 : vector<1x128xf32>
      %cst_23 = arith.constant 9.99999974E-6 : f32
      %30 = vector.broadcast %cst_23 : f32 to vector<1x128xf32>
      %31 = arith.addf %29, %30 : vector<1x128xf32>
      %32 = math.rsqrt %31 : vector<1x128xf32>
      %c0_24 = arith.constant 0 : index
      %c0_25 = arith.constant 0 : index
      %33 = vector.load %arg3[%c0_24, %c0_25] : memref<1x128xf32, #tpu.memory_space<vmem>>, vector<1x128xf32>
      %34 = arith.mulf %33, %32 : vector<1x128xf32>
      %c0_26 = arith.constant 0 : index
      %c0_27 = arith.constant 0 : index
      %35 = vector.load %arg5[%c0_26, %c0_27] : memref<1x128xf32, #tpu.memory_space<vmem>>, vector<1x128xf32>
      tpu.vector_store %arg5[%c0_26, %c0_27], %34 {strides = array<i32>} : memref<1x128xf32, #tpu.memory_space<vmem>>, vector<1x128xf32>,
      %c0_28 = arith.constant 0 : index
      %c0_29 = arith.constant 0 : index
      %36 = vector.load %arg4[%c0_28, %c0_29] : memref<1x128xf32, #tpu.memory_space<vmem>>, vector<1x128xf32>
      %37 = arith.mulf %22, %34 : vector<1x128xf32>
      %38 = arith.subf %36, %37 : vector<1x128xf32>
      %c0_30 = arith.constant 0 : index
      %c0_31 = arith.constant 0 : index
      %39 = vector.load %arg6[%c0_30, %c0_31] : memref<1x128xf32, #tpu.memory_space<vmem>>, vector<1x128xf32>
      tpu.vector_store %arg6[%c0_30, %c0_31], %38 {strides = array<i32>} : memref<1x128xf32, #tpu.memory_space<vmem>>, vector<1x128xf32>,
    } else {
    }
    return
  }
  func.func @transform_0(%arg0: i32) -> (i32, i32) {
    %c0_i32 = arith.constant 0 : i32
    %c0_i32_0 = arith.constant 0 : i32
    return %arg0, %c0_i32 : i32, i32
  }
  func.func @transform_1(%arg0: i32) -> (i32, i32) {
    %c0_i32 = arith.constant 0 : i32
    %c0_i32_0 = arith.constant 0 : i32
    %c0_i32_1 = arith.constant 0 : i32
    return %c0_i32, %c0_i32_0 : i32, i32
  }
  func.func @transform_2(%arg0: i32) -> (i32, i32) {
    %c0_i32 = arith.constant 0 : i32
    %c0_i32_0 = arith.constant 0 : i32
    %c0_i32_1 = arith.constant 0 : i32
    return %c0_i32, %c0_i32_0 : i32, i32
  }
  func.func @transform_3(%arg0: i32) -> (i32, i32) {
    %c0_i32 = arith.constant 0 : i32
    %c0_i32_0 = arith.constant 0 : i32
    %c0_i32_1 = arith.constant 0 : i32
    return %c0_i32, %c0_i32_0 : i32, i32
  }
  func.func @transform_4(%arg0: i32) -> (i32, i32) {
    %c0_i32 = arith.constant 0 : i32
    %c0_i32_0 = arith.constant 0 : i32
    %c0_i32_1 = arith.constant 0 : i32
    return %c0_i32, %c0_i32_0 : i32, i32
  }
  func.func @transform_5(%arg0: i32) -> (i32, i32) {
    %c0_i32 = arith.constant 0 : i32
    %c0_i32_0 = arith.constant 0 : i32
    %c0_i32_1 = arith.constant 0 : i32
    return %c0_i32, %c0_i32_0 : i32, i32
  }
}

</mosaic_0001>

<llo_original>
// kernel: tpu_custom_call.1
$region0: #{tpu_custom_call.1}
  #allocation0 [shape = 'u32[]', space=smem, size = 0x4, offset = 0x4, fixed_abs, tag = 'smem constant byte address 0x4 - core index']
  #allocation1 [shape = 'u32[144,128]{1,0:T(1,128)}', space=vmem, size = 0x12000, scoped, tag = 'internal scratch']
  %s0 = inlined_call_operand.hbm [shape: f32[16,16], index: 0, kind: input, shape index: {}]
  %s1 = inlined_call_operand.hbm [shape: f32[16,128], index: 1, kind: input, shape index: {}]
  %s2 = inlined_call_operand.vmem [shape: f32[1,128], index: 2, kind: input, shape index: {}]
  %s3 = inlined_call_operand.vmem [shape: f32[1,128], index: 3, kind: input, shape index: {}]
  %s4 = inlined_call_operand.hbm [shape: f32[1,128], index: 4, kind: output, shape index: {0}]
  %s5 = inlined_call_operand.hbm [shape: f32[1,128], index: 5, kind: output, shape index: {1}]
  %6 = xla_tuple %s4, %s5
  %s7 = sld [smem:[#allocation0]]
  $region50: #{tpu_custom_call.1} parent=0
    _
  %s9 = ssub.s32 1, %s7
  %s10 = scalar_select 0, %s9, %s7
  $region1: #{tpu_custom_call.1} parent=0
    #allocation2 [shape = 'u8[8192]{0}', space=vmem, size = 0x2000, scoped, tag = 'input window, operand 0, single buffered']
    #allocation3 [shape = 's32[1]{0}', space=sflag, size = 0x4, scoped, tag = 'scoped memory for tpu_custom_call.1']
    #allocation4 [shape = 's32[1]{0}', space=sflag, size = 0x4, scoped, tag = 'scoped memory for tpu_custom_call.1']
    #allocation5 [shape = 'u8[8192]{0}', space=vmem, size = 0x2000, scoped, tag = 'input window, operand 1, single buffered']
    #allocation6 [shape = 's32[1]{0}', space=sflag, size = 0x4, scoped, tag = 'scoped memory for tpu_custom_call.1']
    #allocation7 [shape = 'u8[512]{0}', space=vmem, size = 0x400, scoped, tag = 'output window, operand 0, single buffered']
    #allocation8 [shape = 'u8[512]{0}', space=vmem, size = 0x400, scoped, tag = 'output window, operand 1, single buffered']
    #allocation9 [shape = 's32[1]{0}', space=sflag, size = 0x4, scoped, tag = 'scoped memory for tpu_custom_call.1']
    %11 = vsyncpa [#allocation3], 0
    %12 = vsyncpa [#allocation6], 0
    %13 = vsyncpa [#allocation4], 0
    %14 = vsyncpa [#allocation9], 0
    // Predicated region
    $region2: #{tpu_custom_call.1} parent=1 // pred_check
      _
    $region3: #{tpu_custom_call.1} parent=1 // pred_check_branch
      %16 = sbr.rel (0) target = $region5
    $region4: #{tpu_custom_call.1} parent=1 // pred_region
      %s18 = ssub.s32 256, 256
      %19 = vsyncadd [#allocation3], %s18
      %s20 = sshll.u32 [#allocation2], 4
      %s21 = int_to_ptr.vmem [resolvable:$true] %s20
      %26 = dma.hbm_to_vmem [thread:$0]  %s0, 256, %s21, [#allocation3], 128, 128, 8
    $region5: #{tpu_custom_call.1} parent=1 // pred_fallthru
      _
    // Predicated region
    $region6: #{tpu_custom_call.1} parent=1 // pred_check
      _
    $region7: #{tpu_custom_call.1} parent=1 // pred_check_branch
      %28 = sbr.rel (0) target = $region9
    $region8: #{tpu_custom_call.1} parent=1 // pred_region
      %s30 = ssub.s32 256, 256
      %31 = vsyncadd [#allocation6], %s30
      %s32 = sshll.u32 [#allocation5], 4
      %s33 = int_to_ptr.vmem [resolvable:$true] %s32
      %38 = dma.hbm_to_vmem [thread:$0]  %s1, 256, %s33, [#allocation6], 128, 128, 8
    $region9: #{tpu_custom_call.1} parent=1 // pred_fallthru
      _
    // Predicated region
    $region10: #{tpu_custom_call.1} parent=1 // pred_check
      _
    $region11: #{tpu_custom_call.1} parent=1 // pred_check_branch
      %40 = sbr.rel (0) target = $region13
    $region12: #{tpu_custom_call.1} parent=1 // pred_region
      _
    $region13: #{tpu_custom_call.1} parent=1 // pred_fallthru
      _
    // Predicated region
    $region14: #{tpu_custom_call.1} parent=1 // pred_check
      _
    $region15: #{tpu_custom_call.1} parent=1 // pred_check_branch
      %42 = sbr.rel (0) target = $region17
    $region16: #{tpu_custom_call.1} parent=1 // pred_region
      _
    $region17: #{tpu_custom_call.1} parent=1 // pred_fallthru
      _
    // Predicated region
    $region18: #{tpu_custom_call.1} parent=1 // pred_check
      _
    $region19: #{tpu_custom_call.1} parent=1 // pred_check_branch
      %44 = sbr.rel (0) target = $region21
    $region20: #{tpu_custom_call.1} parent=1 // pred_region
      %45 = dma.done [#allocation3], 256
    $region21: #{tpu_custom_call.1} parent=1 // pred_fallthru
      _
    // Predicated region
    $region22: #{tpu_custom_call.1} parent=1 // pred_check
      _
    $region23: #{tpu_custom_call.1} parent=1 // pred_check_branch
      %47 = sbr.rel (0) target = $region25
    $region24: #{tpu_custom_call.1} parent=1 // pred_region
      %48 = dma.done [#allocation6], 256
    $region25: #{tpu_custom_call.1} parent=1 // pred_fallthru
      _
    %p49 = scmp.eq.s32.totalorder 0, 0
    // Predicated region
    $region26: #{tpu_custom_call.1} parent=1 // pred_check
      %p50 = pneg %p49
    $region27: #{tpu_custom_call.1} parent=1 // pred_check_branch
      %52 = sbr.rel (%p50) target = $region29
    $region28: #{tpu_custom_call.1} parent=1 // pred_region
      %53 = vst [vmem:[#allocation7] sm:$0x1] 0.0
      %54 = vst [vmem:[#allocation8] sm:$0x1] 0.0
    $region29: #{tpu_custom_call.1} parent=1 // pred_fallthru
      _
    %v55 = vld [vmem:[#allocation2] sm:$0xff]
    %v56 = vld [vmem:[#allocation2 + $0x8] sm:$0xff]
    %v57 = vld [vmem:[#allocation5] sm:$0xff]
    %v58 = vld [vmem:[#allocation5 + $0x8] sm:$0xff]
    %vm59 = vcmask 130048
    %v61 = vsel %vm59, %v55, 0
    %v64 = vsel %vm59, %v56, 0
    %66 = vmatprep.subr.mxu0 0.0
    %67 = vmatpush1.msra.mxu0 %v57
    %68 = vmatprep.subr.mxu0 0.0
    %69 = vmatpush1.msra.mxu0 %v58
    %70 = vmatprep.subr.mxu0 0.0
    %71 = vmatpush1.msra.mxu0 0.0
    %72 = vmatprep.subr.mxu0 0.0
    %73 = vmatpush1.msra.mxu0 0.0
    %74 = vmatprep.subr.mxu0 0.0
    %75 = vmatpush1.msra.mxu0 0.0
    %76 = vmatprep.subr.mxu0 0.0
    %77 = vmatpush1.msra.mxu0 0.0
    %78 = vmatprep.subr.mxu0 0.0
    %79 = vmatpush1.msra.mxu0 0.0
    %80 = vmatprep.subr.mxu0 0.0
    %81 = vmatpush1.msra.mxu0 0.0
    %82 = vmatprep.subr.mxu0 0.0
    %83 = vmatpush1.msra.mxu0 0.0
    %84 = vmatprep.subr.mxu0 0.0
    %85 = vmatpush1.msra.mxu0 0.0
    %86 = vmatprep.subr.mxu0 0.0
    %87 = vmatpush1.msra.mxu0 0.0
    %88 = vmatprep.subr.mxu0 0.0
    %89 = vmatpush1.msra.mxu0 0.0
    %90 = vmatprep.subr.mxu0 0.0
    %91 = vmatpush1.msra.mxu0 0.0
    %92 = vmatprep.subr.mxu0 0.0
    %93 = vmatpush1.msra.mxu0 0.0
    %94 = vmatprep.subr.mxu0 0.0
    %95 = vmatpush1.msra.mxu0 0.0
    %96 = vmatprep.subr.mxu0 0.0
    %97 = vmatpush1.msra.mxu0 0.0
    %98 = vmatprep.subr.mxu0 0.0
    %99 = vmatpush1.msra.mxu0 0.0
    %100 = vmatprep.subr.mxu0 0.0
    %101 = vmatpush1.msra.mxu0 0.0
    %102 = vmatprep.subr.mxu0 0.0
    %103 = vmatpush1.msra.mxu0 0.0
    %104 = vmatprep.subr.mxu0 0.0
    %105 = vmatpush1.msra.mxu0 0.0
    %106 = vmatprep.subr.mxu0 0.0
    %107 = vmatpush1.msra.mxu0 0.0
    %108 = vmatprep.subr.mxu0 0.0
    %109 = vmatpush1.msra.mxu0 0.0
    %110 = vmatprep.subr.mxu0 0.0
    %111 = vmatpush1.msra.mxu0 0.0
    %112 = vmatprep.subr.mxu0 0.0
    %113 = vmatpush1.msra.mxu0 0.0
    %114 = vmatprep.subr.mxu0 0.0
    %115 = vmatpush1.msra.mxu0 0.0
    %116 = vmatprep.subr.mxu0 0.0
    %117 = vmatpush1.msra.mxu0 0.0
    %118 = vmatprep.subr.mxu0 0.0
    %119 = vmatpush1.msra.mxu0 0.0
    %120 = vmatprep.subr.mxu0 0.0
    %121 = vmatpush1.msra.mxu0 0.0
    %122 = vmatprep.subr.mxu0 0.0
    %123 = vmatpush1.msra.mxu0 0.0
    %124 = vmatprep.subr.mxu0 0.0
    %125 = vmatpush1.msra.mxu0 0.0
    %126 = vmatprep.subr.mxu0 0.0
    %127 = vmatpush1.msra.mxu0 0.0
    %128 = vmatprep.subr.mxu0 0.0
    %129 = vmatpush1.msra.mxu0 0.0
    %130 = vmatprep.mubr.f32.mxu0 0.0
    %131 = vmatmul.mubr.f32.gmra.mrb[0].mxu0 %v61
    %v132 = vpop.f32.mrb[0].mxu0
    %v133 = vadd.f32 0.0, %v132
    %v134 = vpop.f32.mrb[0].mxu0
    %135 = vmatprep.mubr.f32.mxu0 0.0
    %136 = vmatmul.mubr.f32.gmra.mrb[0].mxu0 %v64
    %v137 = vpop.f32.mrb[0].mxu0
    %v138 = vadd.f32 0.0, %v137
    %v139 = vpop.f32.mrb[0].mxu0
    %140 = vdwg.mxu0
    %v141 = vld [vmem:[#allocation7] sm:$0x1]
    %v142 = vadd.f32 %v133, %v138
    %v143 = vrot.slane %v142, 4
    %v144 = vadd.f32 %v142, %v143
    %v145 = vrot.slane %v144, 2
    %v146 = vadd.f32 %v144, %v145
    %v147 = vrot.slane %v146, 1
    %v148 = vadd.f32 %v146, %v147
    %v149 = vadd.f32 %v141, %v148
    %150 = vst [vmem:[#allocation7] sm:$0x1] %v149
    %v151 = vld [vmem:[#allocation8] sm:$0x1]
    %v152 = vmul.f32 %v133, %v133
    %v153 = vmul.f32 %v138, %v138
    %v154 = vadd.f32 %v152, %v153
    %v155 = vrot.slane %v154, 4
    %v156 = vadd.f32 %v154, %v155
    %v157 = vrot.slane %v156, 2
    %v158 = vadd.f32 %v156, %v157
    %v159 = vrot.slane %v158, 1
    %v160 = vadd.f32 %v158, %v159
    %v161 = vadd.f32 %v151, %v160
    %162 = vst [vmem:[#allocation8] sm:$0x1] %v161
    // Predicated region
    $region30: #{tpu_custom_call.1} parent=1 // pred_check
      %p163 = pneg %p49
    $region31: #{tpu_custom_call.1} parent=1 // pred_check_branch
      %165 = sbr.rel (%p163) target = $region33
    $region32: #{tpu_custom_call.1} parent=1 // pred_region
      %v166 = vld [vmem:[#allocation7] sm:$0x1]
      %v167 = vmul.f32 %v166, 0.0625
      %v168 = vld [vmem:[#allocation8] sm:$0x1]
      %v169 = vmul.f32 %v168, 0.0625
      %v170 = vmul.f32 %v167, %v167
      %v171 = vsub.f32 %v169, %v170
      %v172 = vmax.f32 %v171, 0.0
      %v173 = vadd.f32 %v172, 1e-05
      %v174 = vrsqrt.pop %v173
      %v175 = vld [vmem:[%s2] sm:$0x1]
      %v176 = vmul.f32 %v175, %v174
      %177 = vst [vmem:[#allocation7] sm:$0x1] %v176
      %v178 = vld [vmem:[%s3] sm:$0x1]
      %v179 = vmul.f32 %v167, %v176
      %v180 = vsub.f32 %v178, %v179
      %181 = vst [vmem:[#allocation8] sm:$0x1] %v180
    $region33: #{tpu_custom_call.1} parent=1 // pred_fallthru
      _
    // Predicated region
    $region34: #{tpu_custom_call.1} parent=1 // pred_check
      _
    $region35: #{tpu_custom_call.1} parent=1 // pred_check_branch
      %183 = sbr.rel (0) target = $region37
    $region36: #{tpu_custom_call.1} parent=1 // pred_region
      %s185 = ssub.s32 16, 16
      %186 = vsyncadd [#allocation4], %s185
      %s188 = sshll.u32 [#allocation7], 4
      %s189 = int_to_ptr.vmem [resolvable:$true] %s188
      %191 = dma.vmem_to_hbm [thread:$0]  %s189, 16, %s4, [#allocation4]
    $region37: #{tpu_custom_call.1} parent=1 // pred_fallthru
      _
    // Predicated region
    $region38: #{tpu_custom_call.1} parent=1 // pred_check
      _
    $region39: #{tpu_custom_call.1} parent=1 // pred_check_branch
      %193 = sbr.rel (0) target = $region41
    $region40: #{tpu_custom_call.1} parent=1 // pred_region
      %s195 = ssub.s32 16, 16
      %196 = vsyncadd [#allocation9], %s195
      %s198 = sshll.u32 [#allocation8], 4
      %s199 = int_to_ptr.vmem [resolvable:$true] %s198
      %201 = dma.vmem_to_hbm [thread:$0]  %s199, 16, %s5, [#allocation9]
    $region41: #{tpu_custom_call.1} parent=1 // pred_fallthru
      _
    // Predicated region
    $region42: #{tpu_custom_call.1} parent=1 // pred_check
      _
    $region43: #{tpu_custom_call.1} parent=1 // pred_check_branch
      %203 = sbr.rel (0) target = $region45
    $region44: #{tpu_custom_call.1} parent=1 // pred_region
      %204 = dma.done [#allocation4], 16
    $region45: #{tpu_custom_call.1} parent=1 // pred_fallthru
      _
    // Predicated region
    $region46: #{tpu_custom_call.1} parent=1 // pred_check
      _
    $region47: #{tpu_custom_call.1} parent=1 // pred_check_branch
      %206 = sbr.rel (0) target = $region49
    $region48: #{tpu_custom_call.1} parent=1 // pred_region
      %207 = dma.done [#allocation9], 16
    $region49: #{tpu_custom_call.1} parent=1 // pred_fallthru
      _
    %208 = vsyncpa [#allocation3], 1
    %209 = vsyncpa [#allocation6], 1
    %210 = vsyncpa [#allocation4], 1
    %211 = vsyncpa [#allocation9], 1

</llo_original>
